<compile_context>
chip_gen: v5e
topology: v5e:2x2
jax: 0.10.0
libtpu: 0.0.40
codegen_flags: <defaults>
</compile_context>

<pallas_src>
import functools

import jax
import jax.numpy as jnp
from jax.experimental import pallas as pl
from jax.experimental.pallas import tpu as pltpu

ALPHA = 0.25   # constructor defaults of FocalLossWrapper
GAMMA = 2.0

_LANES = 128
_SUB_F32 = 8
_MAX_GROUPS_PER_BLOCK = 512   # (512, 8, 128) f32 block = 2 MiB per input


def _static_pow(base, gamma):
    """base ** gamma; small integer gamma -> repeated multiply (no log/exp)."""
    g = float(gamma)
    if g == round(g) and 0.0 <= g <= 8.0:
        k = int(round(g))
        if k == 0:
            return jnp.ones_like(base)
        out = base
        for _ in range(k - 1):
            out = out * base
        return out
    # base = 1 - p_t >= 0 always; exp(g*log(x)) handles x == 0 (-> 0) cleanly.
    return jnp.exp(g * jnp.log(base))


def _focal_loss_elementwise(x, t, alpha, gamma):
    """Numerically stable per-element sigmoid focal loss (kernel & JAX tail)."""
    x = x.astype(jnp.float32) if x.dtype != jnp.float32 else x
    t = t.astype(jnp.float32) if t.dtype != jnp.float32 else t
    # Stable binary_cross_entropy_with_logits; reuse e = exp(-|x|) for sigmoid.
    e = jnp.exp(-jnp.abs(x))
    ce = jnp.maximum(x, 0.0) - x * t + jnp.log1p(e)
    r = 1.0 / (1.0 + e)
    p = jnp.where(x >= 0.0, r, e * r)            # sigmoid(x)
    one_minus_pt = p + t - 2.0 * (p * t)         # 1 - p_t, algebraically folded
    loss = ce * _static_pow(one_minus_pt, gamma)
    if alpha >= 0:
        # alpha_t = alpha*t + (1-alpha)*(1-t) = (1-alpha) + (2*alpha-1)*t
        loss = ((1.0 - alpha) + (2.0 * alpha - 1.0) * t) * loss
    return loss


def _focal_kernel(x_ref, t_ref, out_ref, *, alpha, gamma):
    @pl.when(pl.program_id(1) == 0)
    def _init():
        out_ref[...] = jnp.zeros_like(out_ref)

    loss = _focal_loss_elementwise(x_ref[...], t_ref[...], alpha, gamma)
    # Leading-axis VPU add into the resident per-core (1, SUB, 128) accumulator.
    out_ref[...] += jnp.sum(loss, axis=0, keepdims=True)


def _num_core_splits():
    """2-way grid split only where a 'parallel' axis is sharded across cores."""
    try:
        kind = jax.devices()[0].device_kind.lower()
    except Exception:
        return 1
    if "lite" in kind or "v5e" in kind or "v6e" in kind:
        return 1          # single TensorCore per device
    for tag in ("v7", "v5p", "v4"):
        if tag in kind:
            return 2      # dual-TC (v7x) or megacore (v4/v5p)
    return 1


def sigmoid_focal_loss_mean(preds, targets, alpha=ALPHA, gamma=GAMMA,
                            max_groups_per_block=_MAX_GROUPS_PER_BLOCK,
                            n_core_splits=None):
    """Pallas equivalent of sigmoid_focal_loss(..., reduction='mean')."""
    assert preds.shape == targets.shape
    n = preds.size
    if n == 0:
        return jnp.float32(0.0)

    itemsize = max(jnp.dtype(preds.dtype).itemsize,
                   jnp.dtype(targets.dtype).itemsize)
    sub = _SUB_F32 * max(1, 4 // itemsize)   # 8 for f32, 16 for bf16, ...
    grp_elems = sub * _LANES

    x = preds.reshape(-1)
    t = targets.reshape(-1)

    total = None
    main_elems = 0
    total_groups = n // grp_elems
    if total_groups > 0:
        g_blk = min(max_groups_per_block, total_groups)
        num_blocks = total_groups // g_blk
        n_split = n_core_splits if n_core_splits is not None else _num_core_splits()
        n_split = max(1, min(int(n_split), num_blocks))
        # Static rectangular grid: each split runs the same number of blocks.
        # TODO(synk): when num_blocks % n_split != 0 on dual-TC parts, up to
        # n_split-1 blocks fall through to the plain-JAX tail below.
        num_main_blocks = (num_blocks // n_split) * n_split
        blocks_per_split = num_main_blocks // n_split
        main_groups = num_main_blocks * g_blk
        main_elems = main_groups * grp_elems

        # Contiguous, group-aligned prefix -> free reshape, no full-array pad.
        xm = x[:main_elems].reshape(main_groups, sub, _LANES)
        tm = t[:main_elems].reshape(main_groups, sub, _LANES)

        kernel = functools.partial(_focal_kernel,
                                   alpha=float(alpha), gamma=float(gamma))
        idx_in = lambda c, i: (c * blocks_per_split + i, 0, 0)

        partials = pl.pallas_call(
            kernel,
            out_shape=jax.ShapeDtypeStruct((n_split, sub, _LANES), jnp.float32),
            grid=(n_split, blocks_per_split),
            in_specs=[
                pl.BlockSpec((g_blk, sub, _LANES), idx_in),
                pl.BlockSpec((g_blk, sub, _LANES), idx_in),
            ],
            out_specs=pl.BlockSpec((1, sub, _LANES), lambda c, i: (c, 0, 0)),
            compiler_params=pltpu.CompilerParams(
                dimension_semantics=("parallel", "arbitrary"),
                vmem_limit_bytes=32 * 1024 * 1024,
            ),
        )(xm, tm)
        total = jnp.sum(partials, dtype=jnp.float32)

    if main_elems < n:
        # Sub-block remainder: one small fused elementwise+reduce in plain JAX.
        tail = jnp.sum(
            _focal_loss_elementwise(x[main_elems:], t[main_elems:], alpha, gamma),
            dtype=jnp.float32)
        total = tail if total is None else total + tail

    return total / jnp.float32(n)


def _reference(preds, targets, alpha=ALPHA, gamma=GAMMA):
    """Plain-JAX transcription of torchvision.ops.sigmoid_focal_loss (mean)."""
    x = preds.astype(jnp.float32)
    t = targets.astype(jnp.float32)
    p = jax.nn.sigmoid(x)
    ce = jnp.maximum(x, 0.0) - x * t + jnp.log1p(jnp.exp(-jnp.abs(x)))
    p_t = p * t + (1 - p) * (1 - t)
    loss = ce * (1 - p_t) ** gamma
    if alpha >= 0:
        alpha_t = alpha * t + (1 - alpha) * (1 - t)
        loss = alpha_t * loss
    return jnp.mean(loss)


if __name__ == "__main__":
    key = jax.random.PRNGKey(0)
    k1, k2, k3, k4 = jax.random.split(key, 4)

    # Detection-style logits/targets: (B, C, H, W) = (2, 4, 16, 16)
    # 2048 elements = 2 aligned (8,128) groups -> fully handled by the kernel.
    preds = jax.random.normal(k1, (2, 4, 16, 16), dtype=jnp.float32) * 2.0
    targets = (jax.random.uniform(k2, (2, 4, 16, 16)) < 0.25).astype(jnp.float32)
    out = jax.block_until_ready(sigmoid_focal_loss_mean(preds, targets))
    ref = _reference(preds, targets)
    assert jnp.allclose(out, ref, rtol=1e-5, atol=1e-6), (out, ref)

    # Force the multi-block accumulator path (2 blocks of 1 group each).
    out_mb = jax.block_until_ready(
        sigmoid_focal_loss_mean(preds, targets, max_groups_per_block=1))
    assert jnp.allclose(out_mb, ref, rtol=1e-5, atol=1e-6), (out_mb, ref)

    # Ragged size: kernel on the aligned prefix + plain-JAX tail remainder.
    preds2 = jax.random.normal(k3, (2, 5, 17, 13), dtype=jnp.float32) * 2.0
    targets2 = (jax.random.uniform(k4, (2, 5, 17, 13)) < 0.25).astype(jnp.float32)
    out2 = jax.block_until_ready(sigmoid_focal_loss_mean(preds2, targets2))
    ref2 = _reference(preds2, targets2)
    assert jnp.allclose(out2, ref2, rtol=1e-5, atol=1e-6), (out2, ref2)

    # Non-default alpha/gamma (module-level globals of the original script).
    out3 = jax.block_until_ready(
        sigmoid_focal_loss_mean(preds, targets, alpha=0.75, gamma=2.2))
    ref3 = _reference(preds, targets, alpha=0.75, gamma=2.2)
    assert jnp.allclose(out3, ref3, rtol=1e-4, atol=1e-6), (out3, ref3)

    print("KERNEL_OK")
</pallas_src>

<mosaic_0001>
module attributes {stable_mosaic.version = 11 : i64} {
  func.func @_focal_kernel(%arg0: i32, %arg1: i32, %arg2: memref<2x8x128xf32, #tpu.memory_space<vmem>>, %arg3: memref<2x8x128xf32, #tpu.memory_space<vmem>>, %arg4: memref<1x8x128xf32, #tpu.memory_space<vmem>>) attributes {dimension_semantics = [#tpu.dimension_semantics<parallel>, #tpu.dimension_semantics<arbitrary>], iteration_bounds = array<i64: 1, 1>, scalar_prefetch = 0 : i64, scratch_operands = 0 : i64, tpu.core_type = #tpu.core_type<tc>, window_params = [{transform_indices = @transform_0, window_bounds = array<i64: 2, 8, 128>}, {transform_indices = @transform_1, window_bounds = array<i64: 2, 8, 128>}, {transform_indices = @transform_2, window_bounds = array<i64: 1, 8, 128>}]} {
    %c0_i32 = arith.constant 0 : i32
    %0 = arith.cmpi eq, %arg1, %c0_i32 : i32
    %1 = arith.extui %0 : i1 to i32
    %c0_i32_0 = arith.constant 0 : i32
    %2 = arith.cmpi ne, %1, %c0_i32_0 : i32
    scf.if %2 {
      %cst_20 = arith.constant 0.000000e+00 : f32
      %40 = vector.broadcast %cst_20 : f32 to vector<1x8x128xf32>
      %c0_21 = arith.constant 0 : index
      %c0_22 = arith.constant 0 : index
      %c0_23 = arith.constant 0 : index
      %41 = vector.load %arg4[%c0_21, %c0_22, %c0_23] : memref<1x8x128xf32, #tpu.memory_space<vmem>>, vector<1x8x128xf32>
      tpu.vector_store %arg4[%c0_21, %c0_22, %c0_23], %40 {strides = array<i32>} : memref<1x8x128xf32, #tpu.memory_space<vmem>>, vector<1x8x128xf32>,
    } else {
    }
    %c0 = arith.constant 0 : index
    %c0_1 = arith.constant 0 : index
    %c0_2 = arith.constant 0 : index
    %3 = vector.load %arg2[%c0, %c0_1, %c0_2] : memref<2x8x128xf32, #tpu.memory_space<vmem>>, vector<2x8x128xf32>
    %c0_3 = arith.constant 0 : index
    %c0_4 = arith.constant 0 : index
    %c0_5 = arith.constant 0 : index
    %4 = vector.load %arg3[%c0_3, %c0_4, %c0_5] : memref<2x8x128xf32, #tpu.memory_space<vmem>>, vector<2x8x128xf32>
    %5 = math.absf %3 : vector<2x8x128xf32>
    %cst = arith.constant 0.000000e+00 : f32
    %6 = vector.broadcast %cst : f32 to vector<2x8x128xf32>
    %7 = arith.subf %6, %5 : vector<2x8x128xf32>
    %8 = math.exp %7 : vector<2x8x128xf32>
    %cst_6 = arith.constant 0.000000e+00 : f32
    %9 = vector.broadcast %cst_6 : f32 to vector<2x8x128xf32>
    %10 = arith.maximumf %3, %9 : vector<2x8x128xf32>
    %11 = arith.mulf %3, %4 : vector<2x8x128xf32>
    %12 = arith.subf %10, %11 : vector<2x8x128xf32>
    %13 = math.log1p %8 : vector<2x8x128xf32>
    %14 = arith.addf %12, %13 : vector<2x8x128xf32>
    %cst_7 = arith.constant 1.000000e+00 : f32
    %15 = vector.broadcast %cst_7 : f32 to vector<2x8x128xf32>
    %16 = arith.addf %15, %8 : vector<2x8x128xf32>
    %cst_8 = arith.constant 1.000000e+00 : f32
    %17 = vector.broadcast %cst_8 : f32 to vector<2x8x128xf32>
    %18 = arith.divf %17, %16 : vector<2x8x128xf32>
    %cst_9 = arith.constant 0.000000e+00 : f32
    %19 = vector.broadcast %cst_9 : f32 to vector<2x8x128xf32>
    %20 = arith.cmpf oge, %3, %19 : vector<2x8x128xf32>
    %21 = arith.mulf %8, %18 : vector<2x8x128xf32>
    %22 = arith.select %20, %18, %21 : vector<2x8x128xi1>, vector<2x8x128xf32>
    %23 = arith.addf %22, %4 : vector<2x8x128xf32>
    %24 = arith.mulf %22, %4 : vector<2x8x128xf32>
    %cst_10 = arith.constant 2.000000e+00 : f32
    %25 = vector.broadcast %cst_10 : f32 to vector<2x8x128xf32>
    %26 = arith.mulf %25, %24 : vector<2x8x128xf32>
    %27 = arith.subf %23, %26 : vector<2x8x128xf32>
    %28 = arith.mulf %27, %27 : vector<2x8x128xf32>
    %29 = arith.mulf %14, %28 : vector<2x8x128xf32>
    %cst_11 = arith.constant -5.000000e-01 : f32
    %30 = vector.broadcast %cst_11 : f32 to vector<2x8x128xf32>
    %31 = arith.mulf %30, %4 : vector<2x8x128xf32>
    %cst_12 = arith.constant 7.500000e-01 : f32
    %32 = vector.broadcast %cst_12 : f32 to vector<2x8x128xf32>
    %33 = arith.addf %32, %31 : vector<2x8x128xf32>
    %34 = arith.mulf %33, %29 : vector<2x8x128xf32>
    %c0_13 = arith.constant 0 : index
    %c0_14 = arith.constant 0 : index
    %c0_15 = arith.constant 0 : index
    %35 = vector.load %arg4[%c0_13, %c0_14, %c0_15] : memref<1x8x128xf32, #tpu.memory_space<vmem>>, vector<1x8x128xf32>
    %cst_16 = arith.constant dense<0.000000e+00> : vector<8x128xf32>
    %36 = vector.multi_reduction <add>, %34, %cst_16 [0] : vector<2x8x128xf32> to vector<8x128xf32>
    %37 = vector.shape_cast %36 : vector<8x128xf32> to vector<1x8x128xf32>
    %38 = arith.addf %35, %37 : vector<1x8x128xf32>
    %c0_17 = arith.constant 0 : index
    %c0_18 = arith.constant 0 : index
    %c0_19 = arith.constant 0 : index
    %39 = vector.load %arg4[%c0_17, %c0_18, %c0_19] : memref<1x8x128xf32, #tpu.memory_space<vmem>>, vector<1x8x128xf32>
    tpu.vector_store %arg4[%c0_17, %c0_18, %c0_19], %38 {strides = array<i32>} : memref<1x8x128xf32, #tpu.memory_space<vmem>>, vector<1x8x128xf32>,
    return
  }
  func.func @transform_0(%arg0: i32, %arg1: i32) -> (i32, i32, i32) {
    %c1_i32 = arith.constant 1 : i32
    %0 = arith.muli %arg0, %c1_i32 : i32
    %1 = arith.addi %0, %arg1 : i32
    %c0_i32 = arith.constant 0 : i32
    %c0_i32_0 = arith.constant 0 : i32
    %c0_i32_1 = arith.constant 0 : i32
    return %1, %c0_i32, %c0_i32_0 : i32, i32, i32
  }
  func.func @transform_1(%arg0: i32, %arg1: i32) -> (i32, i32, i32) {
    %c1_i32 = arith.constant 1 : i32
    %0 = arith.muli %arg0, %c1_i32 : i32
    %1 = arith.addi %0, %arg1 : i32
    %c0_i32 = arith.constant 0 : i32
    %c0_i32_0 = arith.constant 0 : i32
    %c0_i32_1 = arith.constant 0 : i32
    return %1, %c0_i32, %c0_i32_0 : i32, i32, i32
  }
  func.func @transform_2(%arg0: i32, %arg1: i32) -> (i32, i32, i32) {
    %c0_i32 = arith.constant 0 : i32
    %c0_i32_0 = arith.constant 0 : i32
    %c0_i32_1 = arith.constant 0 : i32
    return %arg0, %c0_i32, %c0_i32_0 : i32, i32, i32
  }
}

</mosaic_0001>

<llo_original>
// kernel: tpu_custom_call.1
$region0: #{tpu_custom_call.1}
  #allocation0 [shape = 'u32[]', space=smem, size = 0x4, offset = 0x4, fixed_abs, tag = 'smem constant byte address 0x4 - core index']
  #allocation1 [shape = 'u32[72,128]{1,0:T(1,128)}', space=vmem, size = 0x9000, scoped, tag = 'internal scratch']
  %s0 = inlined_call_operand.hbm [shape: f32[2,8,128], index: 0, kind: input, shape index: {}]
  %s1 = inlined_call_operand.hbm [shape: f32[2,8,128], index: 1, kind: input, shape index: {}]
  %s2 = inlined_call_operand.hbm [shape: f32[1,8,128], index: 2, kind: output, shape index: {}]
  %s3 = sld [smem:[#allocation0]]
  $region30: #{tpu_custom_call.1} parent=0
    _
  %s5 = ssub.s32 1, %s3
  %s6 = scalar_select 0, %s5, %s3
  $region1: #{tpu_custom_call.1} parent=0
    #allocation2 [shape = 'u8[8192]{0}', space=vmem, size = 0x2000, scoped, tag = 'input window, operand 0, single buffered']
    #allocation3 [shape = 's32[1]{0}', space=sflag, size = 0x4, scoped, tag = 'scoped memory for tpu_custom_call.1']
    #allocation4 [shape = 's32[1]{0}', space=sflag, size = 0x4, scoped, tag = 'scoped memory for tpu_custom_call.1']
    #allocation5 [shape = 'u8[8192]{0}', space=vmem, size = 0x2000, scoped, tag = 'input window, operand 1, single buffered']
    #allocation6 [shape = 's32[1]{0}', space=sflag, size = 0x4, scoped, tag = 'scoped memory for tpu_custom_call.1']
    #allocation7 [shape = 'u8[4096]{0}', space=vmem, size = 0x1000, scoped, tag = 'output window, operand 0, single buffered']
    %7 = vsyncpa [#allocation3], 0
    %8 = vsyncpa [#allocation6], 0
    %9 = vsyncpa [#allocation4], 0
    // Predicated region
    $region2: #{tpu_custom_call.1} parent=1 // pred_check
      _
    $region3: #{tpu_custom_call.1} parent=1 // pred_check_branch
      %11 = sbr.rel (0) target = $region5
    $region4: #{tpu_custom_call.1} parent=1 // pred_region
      %s12 = sadd.s32 0, 0
      %s13 = smul.u32 2, %s12
      %15 = vsyncadd [#allocation3], 0
      %s16 = smul.addr %s13, 8
      %s17 = scalar_lea.hbm %s0, %s16
      %s18 = sshll.u32 %s17, 4
      %s19 = int_to_ptr.hbm [resolvable:$true] %s18
      %s20 = sshll.u32 [#allocation2], 4
      %s21 = int_to_ptr.vmem [resolvable:$true] %s20
      %26 = dma.hbm_to_vmem [thread:$0]  %s19, 256, %s21, [#allocation3], 128, 128, 8
    $region5: #{tpu_custom_call.1} parent=1 // pred_fallthru
      _
    // Predicated region
    $region6: #{tpu_custom_call.1} parent=1 // pred_check
      _
    $region7: #{tpu_custom_call.1} parent=1 // pred_check_branch
      %28 = sbr.rel (0) target = $region9
    $region8: #{tpu_custom_call.1} parent=1 // pred_region
      %s29 = sadd.s32 0, 0
      %s30 = smul.u32 2, %s29
      %32 = vsyncadd [#allocation6], 0
      %s33 = smul.addr %s30, 8
      %s34 = scalar_lea.hbm %s1, %s33
      %s35 = sshll.u32 %s34, 4
      %s36 = int_to_ptr.hbm [resolvable:$true] %s35
      %s37 = sshll.u32 [#allocation5], 4
      %s38 = int_to_ptr.vmem [resolvable:$true] %s37
      %43 = dma.hbm_to_vmem [thread:$0]  %s36, 256, %s38, [#allocation6], 128, 128, 8
    $region9: #{tpu_custom_call.1} parent=1 // pred_fallthru
      _
    // Predicated region
    $region10: #{tpu_custom_call.1} parent=1 // pred_check
      _
    $region11: #{tpu_custom_call.1} parent=1 // pred_check_branch
      %45 = sbr.rel (0) target = $region13
    $region12: #{tpu_custom_call.1} parent=1 // pred_region
      %47 = dma.done [#allocation3], 256
    $region13: #{tpu_custom_call.1} parent=1 // pred_fallthru
      _
    // Predicated region
    $region14: #{tpu_custom_call.1} parent=1 // pred_check
      _
    $region15: #{tpu_custom_call.1} parent=1 // pred_check_branch
      %49 = sbr.rel (0) target = $region17
    $region16: #{tpu_custom_call.1} parent=1 // pred_region
      %51 = dma.done [#allocation6], 256
    $region17: #{tpu_custom_call.1} parent=1 // pred_fallthru
      _
    %s52 = sadd.s32 0, 0
    %s53 = smul.u32 2, %s52
    %s54 = sadd.s32 0, 0
    %s55 = smul.u32 2, %s54
    %p56 = scmp.eq.s32.totalorder 0, 0
    // Predicated region
    $region18: #{tpu_custom_call.1} parent=1 // pred_check
      %p57 = pneg %p56
    $region19: #{tpu_custom_call.1} parent=1 // pred_check_branch
      %59 = sbr.rel (%p57) target = $region21
    $region20: #{tpu_custom_call.1} parent=1 // pred_region
      %60 = vst [vmem:[#allocation7] sm:$0xff] 0.0
    $region21: #{tpu_custom_call.1} parent=1 // pred_fallthru
      _
    %v61 = vld [vmem:[#allocation2] sm:$0xff]
    %v62 = vld [vmem:[#allocation2 + $0x8] sm:$0xff]
    %v63 = vld [vmem:[#allocation5] sm:$0xff]
    %v64 = vld [vmem:[#allocation5 + $0x8] sm:$0xff]
    %v65 = vand.u32 2147483647, %v61
    %v66 = vand.u32 2147483647, %v62
    %v67 = vsub.f32 0.0, %v65
    %v68 = vsub.f32 0.0, %v66
    %v69 = vmul.f32 %v67, 1.442695
    %v70 = vpow.pop %v69
    %v71 = vmul.f32 %v68, 1.442695
    %v72 = vpow.pop %v71
    %v73 = vmax.f32 %v61, 0.0
    %v74 = vmax.f32 %v62, 0.0
    %v75 = vmul.f32 %v61, %v63
    %v76 = vmul.f32 %v62, %v64
    %v77 = vsub.f32 %v73, %v75
    %v78 = vsub.f32 %v74, %v76
    %v79 = vadd.f32 %v70, 1.0
    %v80 = vlog2.pop %v79
    %v81 = vmul.f32 %v80, 0.6931472
    %v82 = vmul.f32 -0.5, %v70
    %v83 = vadd.f32 %v82, 1.0
    %v84 = vmul.f32 %v83, %v70
    %v85 = vand.u32 2147483647, %v70
    %vm86 = vcmp.lt.f32.partialorder %v85, 0.0004427343
    %v87 = vsel %vm86, %v84, %v81
    %v88 = vadd.f32 %v72, 1.0
    %v89 = vlog2.pop %v88
    %v90 = vmul.f32 %v89, 0.6931472
    %v91 = vmul.f32 -0.5, %v72
    %v92 = vadd.f32 %v91, 1.0
    %v93 = vmul.f32 %v92, %v72
    %v94 = vand.u32 2147483647, %v72
    %vm95 = vcmp.lt.f32.partialorder %v94, 0.0004427343
    %v96 = vsel %vm95, %v93, %v90
    %v97 = vadd.f32 %v77, %v87
    %v98 = vadd.f32 %v78, %v96
    %v99 = vadd.f32 %v70, 1.0
    %v100 = vadd.f32 %v72, 1.0
    %v101 = vrcp.pop %v99
    %v102 = vmul.f32 %v99, %v101
    %v103 = vsub.f32 1.0, %v102
    %v104 = vmul.f32 %v101, %v103
    %v105 = vadd.f32 %v101, %v104
    %vm106 = vweird.f32 %v99
    %vm107 = vweird.f32 %v101
    %vm108 = vmor %vm106, %vm107
    %v109 = vsel %vm108, %v101, %v105
    %v110 = vand.u32 2147483647, %v99
    %vm111 = vcmp.eq.f32.partialorder %v110, 8.507059e+37
    %v112 = vand.u32 %v99, 2147483648
    %v113 = vor.u32 1.1754944e-38, %v112
    %v114 = vsel %vm111, %v113, %v109
    %v115 = vmul.f32 1.0, %v114
    %v116 = vrcp.pop %v100
    %v117 = vmul.f32 %v100, %v116
    %v118 = vsub.f32 1.0, %v117
    %v119 = vmul.f32 %v116, %v118
    %v120 = vadd.f32 %v116, %v119
    %vm121 = vweird.f32 %v100
    %vm122 = vweird.f32 %v116
    %vm123 = vmor %vm121, %vm122
    %v124 = vsel %vm123, %v116, %v120
    %v125 = vand.u32 2147483647, %v100
    %vm126 = vcmp.eq.f32.partialorder %v125, 8.507059e+37
    %v127 = vand.u32 %v100, 2147483648
    %v128 = vor.u32 1.1754944e-38, %v127
    %v129 = vsel %vm126, %v128, %v124
    %v130 = vmul.f32 1.0, %v129
    %vm131 = vcmp.ge.f32.partialorder %v61, 0.0
    %vm132 = vcmp.ge.f32.partialorder %v62, 0.0
    %v133 = vmul.f32 %v70, %v115
    %v134 = vmul.f32 %v72, %v130
    %v135 = vsel %vm131, %v115, %v133
    %v136 = vsel %vm132, %v130, %v134
    %v137 = vadd.f32 %v135, %v63
    %v138 = vadd.f32 %v136, %v64
    %v139 = vmul.f32 %v135, %v63
    %v140 = vmul.f32 %v136, %v64
    %v141 = vmul.f32 %v139, 2.0
    %v142 = vmul.f32 %v140, 2.0
    %v143 = vsub.f32 %v137, %v141
    %v144 = vsub.f32 %v138, %v142
    %v145 = vmul.f32 %v143, %v143
    %v146 = vmul.f32 %v144, %v144
    %v147 = vmul.f32 %v97, %v145
    %v148 = vmul.f32 %v98, %v146
    %v149 = vmul.f32 %v63, -0.5
    %v150 = vmul.f32 %v64, -0.5
    %v151 = vadd.f32 %v149, 0.75
    %v152 = vadd.f32 %v150, 0.75
    %v153 = vmul.f32 %v151, %v147
    %v154 = vmul.f32 %v152, %v148
    %v155 = vld [vmem:[#allocation7] sm:$0xff]
    %v156 = vadd.f32 %v153, %v154
    %v157 = vadd.f32 %v155, %v156
    %158 = vst [vmem:[#allocation7] sm:$0xff] %v157
    // Predicated region
    $region22: #{tpu_custom_call.1} parent=1 // pred_check
      _
    $region23: #{tpu_custom_call.1} parent=1 // pred_check_branch
      %160 = sbr.rel (0) target = $region25
    $region24: #{tpu_custom_call.1} parent=1 // pred_region
      %162 = vsyncadd [#allocation4], 0
      %s164 = sshll.u32 [#allocation7], 4
      %s165 = int_to_ptr.vmem [resolvable:$true] %s164
      %s166 = sshll.u32 %s2, 4
      %s167 = int_to_ptr.hbm [resolvable:$true] %s166
      %169 = dma.vmem_to_hbm [thread:$0]  %s165, 128, %s167, [#allocation4]
    $region25: #{tpu_custom_call.1} parent=1 // pred_fallthru
      _
    // Predicated region
    $region26: #{tpu_custom_call.1} parent=1 // pred_check
      _
    $region27: #{tpu_custom_call.1} parent=1 // pred_check_branch
      %171 = sbr.rel (0) target = $region29
    $region28: #{tpu_custom_call.1} parent=1 // pred_region
      %173 = dma.done [#allocation4], 128
    $region29: #{tpu_custom_call.1} parent=1 // pred_fallthru
      _
    %174 = vsyncpa [#allocation3], 1
    %175 = vsyncpa [#allocation6], 1
    %176 = vsyncpa [#allocation4], 1

</llo_original>
